<compile_context>
chip_gen: v5e
topology: v5e:2x2
jax: 0.10.0
libtpu: 0.0.40
codegen_flags: <defaults>
</compile_context>

<pallas_src>
import numpy as np
import jax
import jax.numpy as jnp
from jax import lax
from jax.experimental import pallas as pl
from jax.experimental.pallas import tpu as pltpu

EPS = 1e-5  # RevIN / Normalize eps


def _fits_kernel(x_ref, aw_ref, ab_ref, a_ref, bt_ref, o_ref):
    x = x_ref[...]                                         # (L, T) lane-dense f32
    inv_l = 1.0 / x.shape[0]

    # --- Normalize(..., 'norm'): per-column stats over time, one reduction pass ---
    s1 = jnp.sum(x, axis=0, keepdims=True)                 # (1, T)
    s2 = jnp.sum(x * x, axis=0, keepdims=True)             # (1, T)
    mean = s1 * inv_l
    var = jnp.maximum(s2 * inv_l - mean * mean, 0.0)       # unbiased=False
    inv_std = lax.rsqrt(var + EPS)                         # EUP rsqrt
    std = (var + EPS) * inv_std                            # sqrt(v) = v * rsqrt(v)
    aw = aw_ref[...]                                       # (1, T) affine weight
    ab = ab_ref[...]                                       # (1, T) affine bias
    xn = (x - mean) * (inv_std * aw) + ab                  # (L, T) f32

    # --- fused rfft -> complex linear -> zero-pad irfft -> *length_ratio:
    #     one (rows, L) x (L, T) bf16 GEMM, f32 MXU accumulation, time bias ---
    low = jnp.dot(a_ref[...], xn.astype(a_ref.dtype),
                  preferred_element_type=jnp.float32)      # (rows, T)
    low = low + bt_ref[...]                                # (rows, 1) broadcast

    # --- Normalize(..., 'denorm') ---
    inv_aw = pl.reciprocal(aw + EPS * EPS, approx=True)    # EUP reciprocal
    o_ref[...] = (((low - ab) * inv_aw) * std + mean).astype(o_ref.dtype)


def _pick_col_tile(cols, L, N, a_itemsize):
    """Multiple of 128 (<=512) minimizing padded lanes, under a v5e-safe VMEM budget."""
    budget = 12 * 1024 * 1024
    best = None
    for ct in (128, 256, 384, 512):
        cols_p = pl.cdiv(cols, ct) * ct
        pad = cols_p - cols
        # double-buffered x/out blocks, xn f32 + bf16 copy, resident A / bias, aw/ab
        need = (2 * L * ct * 4 + 2 * N * ct * 4 + L * ct * 6
                + N * L * a_itemsize + N * 128 * 4 + 4 * 8 * ct * 4)
        if need > budget:
            continue
        key = (pad, -ct)
        if best is None or key < best[0]:
            best = (key, ct, cols_p)
    if best is None:
        return 128, pl.cdiv(cols, 128) * 128
    return best[1], best[2]


def _block_spec(shape, index_map, single_buffer):
    if single_buffer:
        try:
            return pl.BlockSpec(shape, index_map, pipeline_mode=pl.Buffered(1))
        except TypeError:  # older Pallas without pipeline_mode: fall back silently
            pass
    return pl.BlockSpec(shape, index_map)


def make_fits_forward(params, *, seq_len, pred_len, cut_freq, batch, channels,
                      matmul_dtype=jnp.bfloat16, out_dtype=jnp.float32):
    """Build (once) the fused constant operands + jitted Pallas forward for FITS."""
    aw, ab, wr, wi, br, bi = params
    B, C, L = batch, channels, seq_len
    N = seq_len + pred_len
    length_ratio = (seq_len + pred_len) / seq_len
    f_up = int(cut_freq * length_ratio)
    assert cut_freq <= L // 2 + 1 and f_up <= N // 2 + 1

    # ---------------- host side, ONCE per model: fold the constant chain -----------
    t = np.arange(L)
    fc = np.arange(cut_freq)
    ang_f = 2.0 * np.pi * np.outer(fc, t) / L
    cos_f = np.cos(ang_f)                                   # (Fc, L)  rfft real rows
    sin_f = np.sin(ang_f)                                   # (Fc, L)  rfft -imag rows

    tt = np.arange(N)
    fu = np.arange(f_up)
    ang_i = 2.0 * np.pi * np.outer(tt, fu) / N
    scale = np.where(fu == 0, 1.0 / N, np.where(2 * fu == N, 1.0 / N, 2.0 / N))
    drop_imag = (fu == 0) | (2 * fu == N)                   # irfft ignores imag at DC/Nyquist
    cos_i = np.cos(ang_i) * scale                           # (N, Fu)
    sin_i = np.where(drop_imag, 0.0, np.sin(ang_i) * scale)

    wr64 = np.asarray(wr, np.float64)
    wi64 = np.asarray(wi, np.float64)
    br64 = np.asarray(br, np.float64)
    bi64 = np.asarray(bi, np.float64)

    # yr = (wr@cos_f + wi@sin_f) @ xn + br ;  yi = (wi@cos_f - wr@sin_f) @ xn + bi
    k_real = wr64 @ cos_f + wi64 @ sin_f                    # (Fu, L)
    k_imag = wi64 @ cos_f - wr64 @ sin_f                    # (Fu, L)
    a_np = length_ratio * (cos_i @ k_real - sin_i @ k_imag)  # (N, L)
    bt_np = length_ratio * (cos_i @ br64 - sin_i @ bi64)     # (N, 1)

    # ---------------- tiling decisions ----------------------------------------------
    cols = B * C
    col_tile, cols_p = _pick_col_tile(cols, L, N, np.dtype(matmul_dtype).itemsize)
    n_col = cols_p // col_tile

    # Split the output rows across two "parallel" blocks when there is only one
    # column tile, so v7x's second TensorCore has work.
    if n_col == 1 and N >= 16:
        row_tile = pl.cdiv(pl.cdiv(N, 2), 8) * 8
    else:
        row_tile = N
    n_row = pl.cdiv(N, row_tile)
    n_pad = n_row * row_tile

    a_np = np.pad(a_np, ((0, n_pad - N), (0, 0)))           # avoid partial edge blocks
    bt_np = np.pad(bt_np, ((0, n_pad - N), (0, 0)))
    a_mat = jnp.asarray(a_np, matmul_dtype)                  # (n_pad, L) bf16 by default
    b_time = jnp.asarray(bt_np, jnp.float32)                 # (n_pad, 1)

    # Lane-dense column layout: col = b*C + c, padded to cols_p.
    # NOTE: padded columns have var=0; aw MUST be padded with 1.0 so the approx
    # reciprocal stays well-behaved.
    aw_cols = jnp.pad(jnp.tile(jnp.asarray(aw, jnp.float32), (1, B)),
                      ((0, 0), (0, cols_p - cols)), constant_values=1.0)
    ab_cols = jnp.pad(jnp.tile(jnp.asarray(ab, jnp.float32), (1, B)),
                      ((0, 0), (0, cols_p - cols)))

    col_map = lambda r, j: (0, j)
    row_map = lambda r, j: (r, 0)

    kernel_call = pl.pallas_call(
        _fits_kernel,
        out_shape=jax.ShapeDtypeStruct((n_pad, cols_p), out_dtype),
        grid=(n_row, n_col),
        in_specs=[
            _block_spec((L, col_tile), col_map, n_col == 1),   # x columns
            _block_spec((1, col_tile), col_map, n_col == 1),   # affine weight
            _block_spec((1, col_tile), col_map, n_col == 1),   # affine bias
            _block_spec((row_tile, L), row_map, n_row == 1),   # fused chain matrix A
            _block_spec((row_tile, 1), row_map, n_row == 1),   # fused time-domain bias
        ],
        out_specs=pl.BlockSpec((row_tile, col_tile), lambda r, j: (r, j)),
        compiler_params=pltpu.CompilerParams(
            dimension_semantics=("parallel", "parallel"),
            vmem_limit_bytes=32 * 1024 * 1024),
    )

    # TODO(synk): for channel-heavy datasets (C >= 128) a (B, channel-tile) grid
    # with channels already on the lane axis would skip the wrapper transposes.
    @jax.jit
    def _forward(x_enc, a_mat, b_time, aw_cols, ab_cols):
        x_cols = jnp.transpose(x_enc.astype(jnp.float32), (1, 0, 2)).reshape(L, cols)
        x_cols = jnp.pad(x_cols, ((0, 0), (0, cols_p - cols)))
        out_cols = kernel_call(x_cols, aw_cols, ab_cols, a_mat, b_time)
        out = out_cols[:N, :cols].reshape(N, B, C)
        return jnp.transpose(out, (1, 0, 2))                  # (B, N, C)

    def forward(x_enc):
        return _forward(x_enc, a_mat, b_time, aw_cols, ab_cols)

    return forward


def fits_reference(x, params, *, seq_len, pred_len, cut_freq):
    """Pure-JAX reference of the PyTorch forecast() for verification."""
    aw, ab, wr, wi, br, bi = params
    B, L, C = x.shape
    N = seq_len + pred_len
    lr = (seq_len + pred_len) / seq_len
    f_up = int(cut_freq * lr)

    mean = jnp.mean(x, axis=1, keepdims=True)
    std = jnp.sqrt(jnp.var(x, axis=1, keepdims=True) + EPS)
    xn = (x - mean) / std * aw[None] + ab[None]

    spec = jnp.fft.rfft(xn, axis=1)[:, :cut_freq, :]                 # (B, Fc, C)
    w = (wr + 1j * wi).astype(jnp.complex64)
    bias = (br + 1j * bi).astype(jnp.complex64)                      # (Fu, 1)
    y = jnp.einsum('gf,bfc->bgc', w, spec) + bias[None]              # (B, Fu, C)

    full = jnp.zeros((B, N // 2 + 1, C), jnp.complex64).at[:, :f_up, :].set(y)
    low_xy = jnp.fft.irfft(full, n=N, axis=1) * lr
    return (low_xy - ab[None]) / (aw[None] + EPS * EPS) * std + mean


if __name__ == "__main__":
    # configs: seq_len=16, pred_len=8, enc_in=4, cut_freq=5, task=long_term_forecast
    seq_len, pred_len, enc_in, cut_freq = 16, 8, 4, 5
    B = 2
    N = seq_len + pred_len
    f_up = int(cut_freq * (seq_len + pred_len) / seq_len)

    key = jax.random.PRNGKey(0)
    kx, kwr, kwi, kbr, kbi = jax.random.split(key, 5)
    x_enc = jax.random.normal(kx, (B, seq_len, enc_in), jnp.float32)
    # decoder-side inputs exist only for forward() signature parity; unused by forecast()
    x_mark_enc = jnp.zeros((B, seq_len, 1), jnp.float32)
    x_dec = jnp.zeros((B, pred_len, enc_in), jnp.float32)
    x_mark_dec = jnp.zeros((B, pred_len, 1), jnp.float32)

    # Normalize(affine=True): weight=ones, bias=zeros — exactly as in the module __init__
    aw = jnp.ones((1, enc_in), jnp.float32)
    ab = jnp.zeros((1, enc_in), jnp.float32)
    # complex nn.Linear(cut_freq -> f_up): deterministic synthetic init (real/imag parts)
    wr = 0.1 * jax.random.normal(kwr, (f_up, cut_freq), jnp.float32)
    wi = 0.1 * jax.random.normal(kwi, (f_up, cut_freq), jnp.float32)
    br = 0.1 * jax.random.normal(kbr, (f_up, 1), jnp.float32)
    bi = 0.1 * jax.random.normal(kbi, (f_up, 1), jnp.float32)
    params = (aw, ab, wr, wi, br, bi)

    # bf16 MXU operands (f32 accumulation) by default; pass matmul_dtype=jnp.float32
    # for exact-precision GEMM or out_dtype=jnp.bfloat16 for a bf16 output stream.
    fits_forward = make_fits_forward(
        params, seq_len=seq_len, pred_len=pred_len, cut_freq=cut_freq,
        batch=B, channels=enc_in)

    out = jax.block_until_ready(fits_forward(x_enc))
    assert out.shape == (B, N, enc_in)

    ref = fits_reference(x_enc, params, seq_len=seq_len, pred_len=pred_len,
                         cut_freq=cut_freq)
    np.testing.assert_allclose(np.asarray(out), np.asarray(ref), rtol=5e-2, atol=5e-2)
    print("KERNEL_OK")
</pallas_src>

<mosaic_0001>
module attributes {stable_mosaic.version = 11 : i64} {
  func.func @_fits_kernel(%arg0: i32, %arg1: i32, %arg2: memref<16x128xf32, #tpu.memory_space<vmem>>, %arg3: memref<1x128xf32, #tpu.memory_space<vmem>>, %arg4: memref<1x128xf32, #tpu.memory_space<vmem>>, %arg5: memref<16x16xbf16, #tpu.memory_space<vmem>>, %arg6: memref<16x1xf32, #tpu.memory_space<vmem>>, %arg7: memref<16x128xf32, #tpu.memory_space<vmem>>) attributes {dimension_semantics = [#tpu.dimension_semantics<parallel>, #tpu.dimension_semantics<parallel>], iteration_bounds = array<i64: 2, 1>, scalar_prefetch = 0 : i64, scratch_operands = 0 : i64, tpu.core_type = #tpu.core_type<tc>, window_params = [{pipeline_mode = #tpu.pipeline_mode<synchronous>, transform_indices = @transform_0, window_bounds = array<i64: 16, 128>}, {pipeline_mode = #tpu.pipeline_mode<synchronous>, transform_indices = @transform_1, window_bounds = array<i64: 1, 128>}, {pipeline_mode = #tpu.pipeline_mode<synchronous>, transform_indices = @transform_2, window_bounds = array<i64: 1, 128>}, {transform_indices = @transform_3, window_bounds = array<i64: 16, 16>}, {transform_indices = @transform_4, window_bounds = array<i64: 16, 1>}, {transform_indices = @transform_5, window_bounds = array<i64: 16, 128>}]} {
    %c0 = arith.constant 0 : index
    %c0_0 = arith.constant 0 : index
    %0 = vector.load %arg2[%c0, %c0_0] : memref<16x128xf32, #tpu.memory_space<vmem>>, vector<16x128xf32>
    %cst = arith.constant dense<0.000000e+00> : vector<128xf32>
    %1 = vector.multi_reduction <add>, %0, %cst [0] : vector<16x128xf32> to vector<128xf32>
    %2 = vector.shape_cast %1 : vector<128xf32> to vector<1x128xf32>
    %3 = arith.mulf %0, %0 : vector<16x128xf32>
    %cst_1 = arith.constant dense<0.000000e+00> : vector<128xf32>
    %4 = vector.multi_reduction <add>, %3, %cst_1 [0] : vector<16x128xf32> to vector<128xf32>
    %5 = vector.shape_cast %4 : vector<128xf32> to vector<1x128xf32>
    %cst_2 = arith.constant 6.250000e-02 : f32
    %6 = vector.broadcast %cst_2 : f32 to vector<1x128xf32>
    %7 = arith.mulf %2, %6 : vector<1x128xf32>
    %cst_3 = arith.constant 6.250000e-02 : f32
    %8 = vector.broadcast %cst_3 : f32 to vector<1x128xf32>
    %9 = arith.mulf %5, %8 : vector<1x128xf32>
    %10 = arith.mulf %7, %7 : vector<1x128xf32>
    %11 = arith.subf %9, %10 : vector<1x128xf32>
    %cst_4 = arith.constant 0.000000e+00 : f32
    %12 = vector.broadcast %cst_4 : f32 to vector<1x128xf32>
    %13 = arith.maximumf %11, %12 : vector<1x128xf32>
    %cst_5 = arith.constant 9.99999974E-6 : f32
    %14 = vector.broadcast %cst_5 : f32 to vector<1x128xf32>
    %15 = arith.addf %13, %14 : vector<1x128xf32>
    %16 = math.rsqrt %15 : vector<1x128xf32>
    %cst_6 = arith.constant 9.99999974E-6 : f32
    %17 = vector.broadcast %cst_6 : f32 to vector<1x128xf32>
    %18 = arith.addf %13, %17 : vector<1x128xf32>
    %19 = arith.mulf %18, %16 : vector<1x128xf32>
    %c0_7 = arith.constant 0 : index
    %c0_8 = arith.constant 0 : index
    %20 = vector.load %arg3[%c0_7, %c0_8] : memref<1x128xf32, #tpu.memory_space<vmem>>, vector<1x128xf32>
    %c0_9 = arith.constant 0 : index
    %c0_10 = arith.constant 0 : index
    %21 = vector.load %arg4[%c0_9, %c0_10] : memref<1x128xf32, #tpu.memory_space<vmem>>, vector<1x128xf32>
    %22 = vector.broadcast %7 : vector<1x128xf32> to vector<16x128xf32>
    %23 = arith.subf %0, %22 : vector<16x128xf32>
    %24 = arith.mulf %16, %20 : vector<1x128xf32>
    %25 = vector.broadcast %24 : vector<1x128xf32> to vector<16x128xf32>
    %26 = arith.mulf %23, %25 : vector<16x128xf32>
    %27 = vector.broadcast %21 : vector<1x128xf32> to vector<16x128xf32>
    %28 = arith.addf %26, %27 : vector<16x128xf32>
    %c0_11 = arith.constant 0 : index
    %c0_12 = arith.constant 0 : index
    %29 = vector.load %arg5[%c0_11, %c0_12] : memref<16x16xbf16, #tpu.memory_space<vmem>>, vector<16x16xbf16>
    %30 = arith.truncf %28 : vector<16x128xf32> to vector<16x128xbf16>
    %cst_13 = arith.constant dense<0.000000e+00> : vector<16x128xf32>
    %31 = tpu.matmul %29, %30, %cst_13 {dimension_numbers = #tpu.dot_dimension_numbers<[1], [0], [0], [1], [0, 0, 1, 1], [], []>} : vector<16x16xbf16>, vector<16x128xbf16>, vector<16x128xf32> -> vector<16x128xf32>
    %c0_14 = arith.constant 0 : index
    %c0_15 = arith.constant 0 : index
    %32 = vector.load %arg6[%c0_14, %c0_15] : memref<16x1xf32, #tpu.memory_space<vmem>>, vector<16x1xf32>
    %33 = vector.broadcast %32 : vector<16x1xf32> to vector<16x128xf32>
    %34 = arith.addf %31, %33 : vector<16x128xf32>
    %cst_16 = arith.constant 1.000000e-10 : f32
    %35 = vector.broadcast %cst_16 : f32 to vector<1x128xf32>
    %36 = arith.addf %20, %35 : vector<1x128xf32>
    %37 = tpu.reciprocal %36 {approx = true} : vector<1x128xf32> -> vector<1x128xf32>
    %38 = vector.broadcast %21 : vector<1x128xf32> to vector<16x128xf32>
    %39 = arith.subf %34, %38 : vector<16x128xf32>
    %40 = vector.broadcast %37 : vector<1x128xf32> to vector<16x128xf32>
    %41 = arith.mulf %39, %40 : vector<16x128xf32>
    %42 = vector.broadcast %19 : vector<1x128xf32> to vector<16x128xf32>
    %43 = arith.mulf %41, %42 : vector<16x128xf32>
    %44 = vector.broadcast %7 : vector<1x128xf32> to vector<16x128xf32>
    %45 = arith.addf %43, %44 : vector<16x128xf32>
    %c0_17 = arith.constant 0 : index
    %c0_18 = arith.constant 0 : index
    %46 = vector.load %arg7[%c0_17, %c0_18] : memref<16x128xf32, #tpu.memory_space<vmem>>, vector<16x128xf32>
    tpu.vector_store %arg7[%c0_17, %c0_18], %45 {strides = array<i32>} : memref<16x128xf32, #tpu.memory_space<vmem>>, vector<16x128xf32>,
    return
  }
  func.func @transform_0(%arg0: i32, %arg1: i32) -> (i32, i32) {
    %c0_i32 = arith.constant 0 : i32
    %c0_i32_0 = arith.constant 0 : i32
    return %c0_i32, %arg1 : i32, i32
  }
  func.func @transform_1(%arg0: i32, %arg1: i32) -> (i32, i32) {
    %c0_i32 = arith.constant 0 : i32
    %c0_i32_0 = arith.constant 0 : i32
    return %c0_i32, %arg1 : i32, i32
  }
  func.func @transform_2(%arg0: i32, %arg1: i32) -> (i32, i32) {
    %c0_i32 = arith.constant 0 : i32
    %c0_i32_0 = arith.constant 0 : i32
    return %c0_i32, %arg1 : i32, i32
  }
  func.func @transform_3(%arg0: i32, %arg1: i32) -> (i32, i32) {
    %c0_i32 = arith.constant 0 : i32
    %c0_i32_0 = arith.constant 0 : i32
    return %arg0, %c0_i32 : i32, i32
  }
  func.func @transform_4(%arg0: i32, %arg1: i32) -> (i32, i32) {
    %c0_i32 = arith.constant 0 : i32
    %c0_i32_0 = arith.constant 0 : i32
    return %arg0, %c0_i32 : i32, i32
  }
  func.func @transform_5(%arg0: i32, %arg1: i32) -> (i32, i32) {
    %c0_i32 = arith.constant 0 : i32
    return %arg0, %arg1 : i32, i32
  }
}

</mosaic_0001>

<llo_original>
// kernel: _forward.1
$region0: #{_forward.1}
  #allocation0 [shape = 'u32[]', space=smem, size = 0x4, offset = 0x4, fixed_abs, tag = 'smem constant byte address 0x4 - core index']
  #allocation1 [shape = 'u32[72,128]{1,0:T(1,128)}', space=vmem, size = 0x9000, scoped, tag = 'internal scratch']
  %s0 = inlined_call_operand.vmem [shape: f32[16,128], index: 0, kind: input, shape index: {}]
  %s1 = inlined_call_operand.vmem [shape: f32[1,128], index: 1, kind: input, shape index: {}]
  %s2 = inlined_call_operand.vmem [shape: f32[1,128], index: 2, kind: input, shape index: {}]
  %s3 = inlined_call_operand.vmem [shape: bf16[32,16], index: 3, kind: input, shape index: {}]
  %s4 = inlined_call_operand.vmem [shape: f32[32,1], index: 4, kind: input, shape index: {}]
  %s5 = inlined_call_operand.vmem [shape: f32[32,128], index: 5, kind: output, shape index: {}]
  %s6 = sld [smem:[#allocation0]]
  $region53: #{_forward.1} parent=0
    _
  %s8 = ssub.s32 1, %s6
  %s9 = scalar_select 0, %s8, %s6
  loop: start=0, step=1, limit=4
  $region2: #{_forward.1} parent=0 // loop_pre_header
    _
  $region3: #{_forward.1} parent=0 // loop_header
    %s11 = sphi 0, %s15
    %p12 = scmp.ge.s32.totalorder %s11, 4
    %s18 = sphi 0, %s30
    %s19 = sphi 0, %s26
    %s20 = sphi 0, %s18
    %s21 = sphi 0, %s19
    %s22 = sphi 0, %s20
    %s23 = sphi 0, %s21
    %s33 = sphi 0, %s35
    %s36 = sphi 0, %s33
    %s37 = sphi 0, %s36
    %s53 = sphi 0, %s37
    %s59 = sphi 0, %s61
    %s62 = sphi 0, %s59
    %s63 = sphi 0, %s62
    %s79 = sphi 0, %s63
    %s85 = sphi 0, %s87
    %s88 = sphi 0, %s85
    %s89 = sphi 0, %s88
    %s105 = sphi 0, %s89
    %s111 = sphi 0, %s113
    %s114 = sphi 0, %s111
    %s115 = sphi 0, %s114
    %s131 = sphi 0, %s115
    %s137 = sphi 0, %s139
    %s140 = sphi 0, %s137
    %s141 = sphi 0, %s140
    %s157 = sphi 0, %s141
    %s165 = sphi 0, %s167
    %s168 = sphi 0, %s165
    %s169 = sphi 0, %s168
    %s185 = sphi 0, %s169
  $region4: #{_forward.1} parent=0 // loop_header_branch
    %14 = sbr.rel (%p12) target = $region8
  $region5: #{_forward.1} parent=0 // loop_body
    %s16 = ssub.s32 %s11, 1
    %s17 = ssub.s32 %s11, 2
    %s24 = sadd.s32 1, %s19
    %p25 = scmp.ge.s32.totalorder %s24, 1
    %s26 = scalar_select %p25, 0, %s24
    %s27 = sadd.s32 1, %s18
    %s28 = scalar_select %p25, %s27, %s18
    %p29 = scmp.ge.s32.totalorder %s28, 2
    %s30 = scalar_select %p29, 0, %s28
    %s31 = ssub.s32 %s19, %s26
    %p32 = scmp.eq.s32.totalorder %s31, 0
    %s34 = sadd.s32 %s33, 1
    %s35 = scalar_select %p32, %s33, %s34
    %p38 = pneg %p32
    %p39 = scmp.eq.s32.totalorder %s11, 1
    %p40 = por %p38, %p39
    %p41 = scmp.ne.s32.totalorder %s33, %s36
    %p42 = scmp.eq.s32.totalorder %s11, 0
    %p43 = por %p41, %p42
    %p44 = scmp.ne.s32.totalorder %s33, %s36
    %p45 = scmp.eq.s32.totalorder %s16, 1
    %p46 = por %p44, %p45
    %p47 = scmp.ne.s32.totalorder %s36, %s37
    %p48 = scmp.eq.s32.totalorder %s16, 0
    %p49 = por %p47, %p48
    %p50 = scmp.ne.s32.totalorder %s36, %s37
    %p51 = scmp.eq.s32.totalorder %s17, 1
    %p52 = por %p50, %p51
    %p54 = scmp.ne.s32.totalorder %s37, %s53
    %p55 = scmp.eq.s32.totalorder %s17, 0
    %p56 = por %p54, %p55
    %s57 = ssub.s32 %s19, %s26
    %p58 = scmp.eq.s32.totalorder %s57, 0
    %s60 = sadd.s32 %s59, 1
    %s61 = scalar_select %p58, %s59, %s60
    %p64 = pneg %p58
    %p65 = scmp.eq.s32.totalorder %s11, 1
    %p66 = por %p64, %p65
    %p67 = scmp.ne.s32.totalorder %s59, %s62
    %p68 = scmp.eq.s32.totalorder %s11, 0
    %p69 = por %p67, %p68
    %p70 = scmp.ne.s32.totalorder %s59, %s62
    %p71 = scmp.eq.s32.totalorder %s16, 1
    %p72 = por %p70, %p71
    %p73 = scmp.ne.s32.totalorder %s62, %s63
    %p74 = scmp.eq.s32.totalorder %s16, 0
    %p75 = por %p73, %p74
    %p76 = scmp.ne.s32.totalorder %s62, %s63
    %p77 = scmp.eq.s32.totalorder %s17, 1
    %p78 = por %p76, %p77
    %p80 = scmp.ne.s32.totalorder %s63, %s79
    %p81 = scmp.eq.s32.totalorder %s17, 0
    %p82 = por %p80, %p81
    %s83 = ssub.s32 %s19, %s26
    %p84 = scmp.eq.s32.totalorder %s83, 0
    %s86 = sadd.s32 %s85, 1
    %s87 = scalar_select %p84, %s85, %s86
    %p90 = pneg %p84
    %p91 = scmp.eq.s32.totalorder %s11, 1
    %p92 = por %p90, %p91
    %p93 = scmp.ne.s32.totalorder %s85, %s88
    %p94 = scmp.eq.s32.totalorder %s11, 0
    %p95 = por %p93, %p94
    %p96 = scmp.ne.s32.totalorder %s85, %s88
    %p97 = scmp.eq.s32.totalorder %s16, 1
    %p98 = por %p96, %p97
    %p99 = scmp.ne.s32.totalorder %s88, %s89
    %p100 = scmp.eq.s32.totalorder %s16, 0
    %p101 = por %p99, %p100
    %p102 = scmp.ne.s32.totalorder %s88, %s89
    %p103 = scmp.eq.s32.totalorder %s17, 1
    %p104 = por %p102, %p103
    %p106 = scmp.ne.s32.totalorder %s89, %s105
    %p107 = scmp.eq.s32.totalorder %s17, 0
    %p108 = por %p106, %p107
    %s109 = ssub.s32 %s18, %s30
    %p110 = scmp.eq.s32.totalorder %s109, 0
    %s112 = sadd.s32 %s111, 1
    %s113 = scalar_select %p110, %s111, %s112
    %p116 = pneg %p110
    %p117 = scmp.eq.s32.totalorder %s11, 1
    %p118 = por %p116, %p117
    %p119 = scmp.ne.s32.totalorder %s111, %s114
    %p120 = scmp.eq.s32.totalorder %s11, 0
    %p121 = por %p119, %p120
    %p122 = scmp.ne.s32.totalorder %s111, %s114
    %p123 = scmp.eq.s32.totalorder %s16, 1
    %p124 = por %p122, %p123
    %p125 = scmp.ne.s32.totalorder %s114, %s115
    %p126 = scmp.eq.s32.totalorder %s16, 0
    %p127 = por %p125, %p126
    %p128 = scmp.ne.s32.totalorder %s114, %s115
    %p129 = scmp.eq.s32.totalorder %s17, 1
    %p130 = por %p128, %p129
    %p132 = scmp.ne.s32.totalorder %s115, %s131
    %p133 = scmp.eq.s32.totalorder %s17, 0
    %p134 = por %p132, %p133
    %s135 = ssub.s32 %s18, %s30
    %p136 = scmp.eq.s32.totalorder %s135, 0
    %s138 = sadd.s32 %s137, 1
    %s139 = scalar_select %p136, %s137, %s138
    %p142 = pneg %p136
    %p143 = scmp.eq.s32.totalorder %s11, 1
    %p144 = por %p142, %p143
    %p145 = scmp.ne.s32.totalorder %s137, %s140
    %p146 = scmp.eq.s32.totalorder %s11, 0
    %p147 = por %p145, %p146
    %p148 = scmp.ne.s32.totalorder %s137, %s140
    %p149 = scmp.eq.s32.totalorder %s16, 1
    %p150 = por %p148, %p149
    %p151 = scmp.ne.s32.totalorder %s140, %s141
    %p152 = scmp.eq.s32.totalorder %s16, 0
    %p153 = por %p151, %p152
    %p154 = scmp.ne.s32.totalorder %s140, %s141
    %p155 = scmp.eq.s32.totalorder %s17, 1
    %p156 = por %p154, %p155
    %p158 = scmp.ne.s32.totalorder %s141, %s157
    %p159 = scmp.eq.s32.totalorder %s17, 0
    %p160 = por %p158, %p159
    %s161 = ssub.s32 %s18, %s30
    %s162 = ssub.s32 %s19, %s26
    %s163 = sor.u32 %s161, %s162
    %p164 = scmp.eq.s32.totalorder %s163, 0
    %s166 = sadd.s32 %s165, 1
    %s167 = scalar_select %p164, %s165, %s166
    %p170 = pneg %p164
    %p171 = scmp.eq.s32.totalorder %s11, 1
    %p172 = por %p170, %p171
    %p173 = scmp.ne.s32.totalorder %s165, %s168
    %p174 = scmp.eq.s32.totalorder %s11, 0
    %p175 = por %p173, %p174
    %p176 = scmp.ne.s32.totalorder %s165, %s168
    %p177 = scmp.eq.s32.totalorder %s16, 1
    %p178 = por %p176, %p177
    %p179 = scmp.ne.s32.totalorder %s168, %s169
    %p180 = scmp.eq.s32.totalorder %s16, 0
    %p181 = por %p179, %p180
    %p182 = scmp.ne.s32.totalorder %s168, %s169
    %p183 = scmp.eq.s32.totalorder %s17, 1
    %p184 = por %p182, %p183
    %p186 = scmp.ne.s32.totalorder %s169, %s185
    %p187 = scmp.eq.s32.totalorder %s17, 0
    %p188 = por %p186, %p187
    %p189 = scmp.le.s32.totalorder 1, %s11
    %p190 = scmp.lt.s32.totalorder %s11, 3
    %p191 = pnand %p189, %p190
    %p192 = pneg %p191
    // Predicated region
    $region9: #{_forward.1} parent=5 // pred_check
      _
    $region10: #{_forward.1} parent=5 // pred_check_branch
      %194 = sbr.rel (%p191) target = $region12
    $region11: #{_forward.1} parent=5 // pred_region
      %s195 = ssub.s32 %s11, 1
      // Predicated region
      $region13: #{_forward.1} parent=11 // pred_check
        %p196 = pneg %p49
      $region14: #{_forward.1} parent=11 // pred_check_branch
        %198 = sbr.rel (%p196) target = $region16
      $region15: #{_forward.1} parent=11 // pred_region
        %p199 = scmp.lt.s32.totalorder %s21, 0
        %s200 = scalar_select %p199, %s21, 0
        %s201 = smul.addr %s200, 8
        %s202 = scalar_lea.vmem %s0, %s201
      $region16: #{_forward.1} parent=11 // pred_fallthru
        _
      // Predicated region
      $region17: #{_forward.1} parent=11 // pred_check
        %p203 = pneg %p75
      $region18: #{_forward.1} parent=11 // pred_check_branch
        %205 = sbr.rel (%p203) target = $region20
      $region19: #{_forward.1} parent=11 // pred_region
        %p206 = scmp.lt.s32.totalorder %s21, 0
        %s207 = scalar_select %p206, %s21, 0
        %s208 = scalar_lea.vmem %s1, %s207
      $region20: #{_forward.1} parent=11 // pred_fallthru
        _
      // Predicated region
      $region21: #{_forward.1} parent=11 // pred_check
        %p209 = pneg %p101
      $region22: #{_forward.1} parent=11 // pred_check_branch
        %211 = sbr.rel (%p209) target = $region24
      $region23: #{_forward.1} parent=11 // pred_region
        %p212 = scmp.lt.s32.totalorder %s21, 0
        %s213 = scalar_select %p212, %s21, 0
        %s214 = scalar_lea.vmem %s2, %s213
      $region24: #{_forward.1} parent=11 // pred_fallthru
        _
    $region12: #{_forward.1} parent=5 // pred_fallthru
      _
    %p215 = scmp.lt.s32.totalorder %s11, 2
    // Predicated region
    $region25: #{_forward.1} parent=5 // pred_check
      %p216 = pneg %p215
    $region26: #{_forward.1} parent=5 // pred_check_branch
      %218 = sbr.rel (%p216) target = $region28
    $region27: #{_forward.1} parent=5 // pred_region
      // Predicated region
      $region29: #{_forward.1} parent=27 // pred_check
        %p219 = pneg %p121
      $region30: #{_forward.1} parent=27 // pred_check_branch
        %221 = sbr.rel (%p219) target = $region32
      $region31: #{_forward.1} parent=27 // pred_region
        %s222 = smul.u32 2, %s18
        %p223 = scmp.lt.s32.totalorder %s222, 3
        %s224 = scalar_select %p223, %s222, 3
        %s225 = smul.addr %s224, 4
        %s226 = scalar_lea.vmem %s3, %s225
        %s227 = smul.u32 2, %s18
      $region32: #{_forward.1} parent=27 // pred_fallthru
        _
      // Predicated region
      $region33: #{_forward.1} parent=27 // pred_check
        %p228 = pneg %p147
      $region34: #{_forward.1} parent=27 // pred_check_branch
        %230 = sbr.rel (%p228) target = $region36
      $region35: #{_forward.1} parent=27 // pred_region
        %s231 = smul.u32 2, %s18
        %p232 = scmp.lt.s32.totalorder %s231, 3
        %s233 = scalar_select %p232, %s231, 3
        %s234 = smul.addr %s233, 8
        %s235 = scalar_lea.vmem %s4, %s234
        %s236 = smul.u32 2, %s18
      $region36: #{_forward.1} parent=27 // pred_fallthru
        _
    $region28: #{_forward.1} parent=5 // pred_fallthru
      _
    %p237 = scmp.le.s32.totalorder 1, %s11
    %p238 = scmp.lt.s32.totalorder %s11, 3
    %p239 = pnand %p237, %p238
    %p240 = pneg %p239
    // Predicated region
    $region37: #{_forward.1} parent=5 // pred_check
      _
    $region38: #{_forward.1} parent=5 // pred_check_branch
      %242 = sbr.rel (%p239) target = $region40
    $region39: #{_forward.1} parent=5 // pred_region
      %s243 = ssub.s32 %s11, 1
      %p244 = scmp.lt.s32.totalorder %s21, 0
      %s245 = scalar_select %p244, %s21, 0
      %s246 = smul.addr %s245, 8
      %s247 = scalar_lea.vmem %s0, %s246
      %p248 = pneg %p49
      %p249 = pneg %p46
      %p250 = scmp.lt.s32.totalorder %s21, 0
      %s251 = scalar_select %p250, %s21, 0
      %s252 = scalar_lea.vmem %s1, %s251
      %p253 = pneg %p75
      %p254 = pneg %p72
      %p255 = scmp.lt.s32.totalorder %s21, 0
      %s256 = scalar_select %p255, %s21, 0
      %s257 = scalar_lea.vmem %s2, %s256
      %p258 = pneg %p101
      %p259 = pneg %p98
      %s260 = smul.u32 2, %s20
      %p261 = scmp.lt.s32.totalorder %s260, 3
      %s262 = scalar_select %p261, %s260, 3
      %s263 = smul.addr %s262, 4
      %s264 = scalar_lea.vmem %s3, %s263
      %p265 = pneg %p127
      %p266 = pneg %p124
      %s267 = smul.u32 2, %s20
      %p268 = scmp.lt.s32.totalorder %s267, 3
      %s269 = scalar_select %p268, %s267, 3
      %s270 = smul.addr %s269, 8
      %s271 = scalar_lea.vmem %s4, %s270
      %p272 = pneg %p153
      %p273 = pneg %p150
      %p274 = pneg %p181
      %p275 = pneg %p178
      %s276 = smul.u32 2, %s20
      %p277 = scmp.lt.s32.totalorder %s276, 3
      %s278 = scalar_select %p277, %s276, 3
      %p279 = scmp.lt.s32.totalorder %s21, 0
      %s280 = scalar_select %p279, %s21, 0
      %s281 = sadd.s32 %s280, %s278
      %s282 = smul.addr %s281, 8
      %s283 = scalar_lea.vmem %s5, %s282
      %p284 = scmp.lt.s32.totalorder %s21, 0
      %s285 = scalar_select %p284, %s21, 0
      %s286 = smul.addr %s285, 8
      %s287 = scalar_lea.vmem %s0, %s286
      %p288 = scmp.lt.s32.totalorder %s21, 0
      %s289 = scalar_select %p288, %s21, 0
      %s290 = scalar_lea.vmem %s1, %s289
      %p291 = scmp.lt.s32.totalorder %s21, 0
      %s292 = scalar_select %p291, %s21, 0
      %s293 = scalar_lea.vmem %s2, %s292
      %s294 = smul.u32 2, %s20
      %p295 = scmp.lt.s32.totalorder %s294, 3
      %s296 = scalar_select %p295, %s294, 3
      %s297 = smul.addr %s296, 4
      %s298 = scalar_lea.vmem %s3, %s297
      %s299 = smul.u32 2, %s20
      %s300 = smul.u32 2, %s20
      %p301 = scmp.lt.s32.totalorder %s300, 3
      %s302 = scalar_select %p301, %s300, 3
      %s303 = smul.addr %s302, 8
      %s304 = scalar_lea.vmem %s4, %s303
      %s305 = smul.u32 2, %s20
      %s306 = smul.u32 2, %s20
      %p307 = scmp.lt.s32.totalorder %s306, 3
      %s308 = scalar_select %p307, %s306, 3
      %p309 = scmp.lt.s32.totalorder %s21, 0
      %s310 = scalar_select %p309, %s21, 0
      %s311 = sadd.s32 %s310, %s308
      %s312 = smul.addr %s311, 8
      %s313 = scalar_lea.vmem %s5, %s312
      %s314 = smul.u32 2, %s20
      %v316 = vld [vmem:[%s287] sm:$0xff]
      %v317 = vld [vmem:[%s287 + $0x8] sm:$0xff]
      %v318 = vadd.f32 %v316, %v317
      %v319 = vrot.slane %v318, 4
      %v320 = vadd.f32 %v318, %v319
      %v321 = vrot.slane %v320, 2
      %v322 = vadd.f32 %v320, %v321
      %v323 = vrot.slane %v322, 1
      %v324 = vadd.f32 %v322, %v323
      %v325 = vmul.f32 %v316, %v316
      %v326 = vmul.f32 %v317, %v317
      %v327 = vadd.f32 %v325, %v326
      %v328 = vrot.slane %v327, 4
      %v329 = vadd.f32 %v327, %v328
      %v330 = vrot.slane %v329, 2
      %v331 = vadd.f32 %v329, %v330
      %v332 = vrot.slane %v331, 1
      %v333 = vadd.f32 %v331, %v332
      %v334 = vmul.f32 %v324, 0.0625
      %v335 = vmul.f32 %v333, 0.0625
      %v336 = vmul.f32 %v334, %v334
      %v337 = vsub.f32 %v335, %v336
      %v338 = vmax.f32 %v337, 0.0
      %v339 = vadd.f32 %v338, 1e-05
      %v340 = vrsqrt.pop %v339
      %v341 = vmul.f32 %v340, %v339
      %v342 = vmul.f32 %v341, %v340
      %v343 = vmul.f32 0.5, %v342
      %v344 = vsub.f32 1.5, %v343
      %v345 = vmul.f32 %v340, %v344
      %vm346 = vweird.f32 %v339
      %vm347 = vweird.f32 %v340
      %vm348 = vmor %vm346, %vm347
      %v349 = vsel %vm348, %v340, %v345
      %v350 = vmul.f32 %v339, %v349
      %v351 = vld [vmem:[%s290] sm:$0x1]
      %v352 = vld [vmem:[%s293] sm:$0x1]
      %v353 = vsub.f32 %v316, %v334
      %v354 = vsub.f32 %v317, %v334
      %v355 = vmul.f32 %v349, %v351
      %v356 = vperm.slane %v355, 0
      %v357 = vmul.f32 %v353, %v356
      %v358 = vmul.f32 %v354, %v356
      %v360 = vperm.slane %v352, 0
      %v362 = vadd.f32 %v357, %v360
      %v363 = vadd.f32 %v358, %v360
      %v364 = vld [vmem:[%s298] sm:$0xf]
      %v365 = vld [vmem:[%s298 + $0x4] sm:$0xf]
      %v366 = vpack.c.bf16 %v363, %v362
      %v367 = vld [vmem:[%s304] sm:$0xff]
      %v368 = vld [vmem:[%s304 + $0x8] sm:$0xff]
      %370 = vset.pattern.permute.xlu0 0
      %371 = vperm.xlu0 %370, %v367
      %v372 = vpop.permute.xlu0 %371
      %375 = vset.pattern.permute.xlu0 0
      %376 = vperm.xlu0 %375, %v368
      %v377 = vpop.permute.xlu0 %376
      %v381 = vunpack.c.l.b16 %v364
      %v382 = vunpack.c.l.b16 %v365
      %v383 = vpack.c.b16 %v382, %v381
      %vm384 = vcmask 130048
      %v386 = vsel %vm384, %v383, 0
      %388 = vmatpush.bf16.msra.mxu0 0
      %389 = vmatpush.bf16.msra.mxu0 0
      %390 = vmatpush.bf16.msra.mxu0 0
      %391 = vmatpush.bf16.msra.mxu0 0
      %392 = vmatpush.bf16.msra.mxu0 0
      %393 = vmatpush.bf16.msra.mxu0 0
      %394 = vmatpush.bf16.msra.mxu0 0
      %395 = vmatpush.bf16.msra.mxu0 %v366
      %396 = vmatmul.bf16.gmra.mxu0 %v386
      %v397 = vpop.f32.mrf.mxu0
      %v398 = vadd.f32 %v372, %v397
      %v399 = vpop.f32.mrf.mxu0
      %v400 = vadd.f32 %v377, %v399
      %401 = vdwg.mxu0
      %v402 = vadd.f32 %v351, 1e-10
      %v403 = vrcp.pop %v402
      %v404 = vsub.f32 %v398, %v360
      %v405 = vsub.f32 %v400, %v360
      %v407 = vperm.slane %v403, 0
      %v409 = vmul.f32 %v404, %v407
      %v410 = vmul.f32 %v405, %v407
      %v411 = vmul.f32 %v409, %v350
      %v412 = vmul.f32 %v410, %v350
      %v413 = vadd.f32 %v411, %v334
      %v414 = vadd.f32 %v412, %v334
      %415 = vst [vmem:[%s313] sm:$0xff] %v413
      %416 = vst [vmem:[%s313 + $0x8] sm:$0xff] %v414
      %s417 = smul.u32 2, %s20
      %p418 = scmp.lt.s32.totalorder %s417, 3
      %s419 = scalar_select %p418, %s417, 3
      %p420 = scmp.lt.s32.totalorder %s21, 0
      %s421 = scalar_select %p420, %s21, 0
      %s422 = sadd.s32 %s421, %s419
      %s423 = smul.addr %s422, 8
      %s424 = scalar_lea.vmem %s5, %s423
      // Predicated region
      $region41: #{_forward.1} parent=39 // pred_check
        %p425 = pneg %p178
      $region42: #{_forward.1} parent=39 // pred_check_branch
        %427 = sbr.rel (%p425) target = $region44
      $region43: #{_forward.1} parent=39 // pred_region
        %s428 = smul.u32 2, %s20
      $region44: #{_forward.1} parent=39 // pred_fallthru
        _
    $region40: #{_forward.1} parent=5 // pred_fallthru
      _
    %p429 = scmp.le.s32.totalorder 2, %s11
    // Predicated region
    $region45: #{_forward.1} parent=5 // pred_check
      %p430 = pneg %p429
    $region46: #{_forward.1} parent=5 // pred_check_branch
      %432 = sbr.rel (%p430) target = $region48
    $region47: #{_forward.1} parent=5 // pred_region
      %s433 = ssub.s32 %s11, 2
      // Predicated region
      $region49: #{_forward.1} parent=47 // pred_check
        %p434 = pneg %p184
      $region50: #{_forward.1} parent=47 // pred_check_branch
        %436 = sbr.rel (%p434) target = $region52
      $region51: #{_forward.1} parent=47 // pred_region
        %s437 = smul.u32 2, %s22
        %p438 = scmp.lt.s32.totalorder %s437, 3
        %s439 = scalar_select %p438, %s437, 3
        %p440 = scmp.lt.s32.totalorder %s23, 0
        %s441 = scalar_select %p440, %s23, 0
        %s442 = sadd.s32 %s441, %s439
        %s443 = smul.addr %s442, 8
        %s444 = scalar_lea.vmem %s5, %s443
      $region52: #{_forward.1} parent=47 // pred_fallthru
        _
    $region48: #{_forward.1} parent=5 // pred_fallthru
      _
  $region6: #{_forward.1} parent=0 // loop_footer
    %s15 = sadd.s32 1, %s11
  $region7: #{_forward.1} parent=0 // loop_footer_branch
    %10 = sbr.rel target = $region3
  $region8: #{_forward.1} parent=0 // loop_exit
    _

</llo_original>
